<compile_context>
chip_gen: v6e
topology: v6e:2x2x1
jax: 0.10.0
libtpu: 0.0.40
codegen_flags: <defaults>
</compile_context>

<pallas_src>
import functools

import jax
import jax.numpy as jnp
from jax.experimental import pallas as pl
from jax.experimental.pallas import tpu as pltpu

_LANE = 128
_ROW = 16          # bf16 packs 16 rows per vreg sublane group


def _round_up(x, m):
    return (x + m - 1) // m * m


def _ca_kernel(x_ref, w_ref, b_ref, eps_ref, cond_ref, muvar_ref, *, pad_cd):
    # In-kernel bf16 cast of x (hidden under the input DMA), MXU matmul with
    # f32 accumulation; all epilogue math in f32.
    x_bf = x_ref[...].astype(jnp.bfloat16)
    y = jnp.dot(x_bf, w_ref[...], preferred_element_type=jnp.float32)
    y = y + b_ref[...]                             # (TILE_B, 4*pad_cd)

    half = 2 * pad_cd                              # 128-aligned GLU split
    glu = y[:, :half] * jax.nn.sigmoid(y[:, half:])  # F.glu(y, dim=-1)

    # glu is already [mu | log_var] in this padded layout -> single aligned
    # f32 store, no concatenate, no extra temp.
    muvar_ref[...] = glu

    mu = glu[:, :pad_cd]                           # 128-aligned split
    log_var = glu[:, pad_cd:]
    std = jnp.exp(log_var * 0.5)                   # EUP transcendental
    cond = mu + eps_ref[...].astype(jnp.float32) * std
    cond_ref[...] = cond.astype(cond_ref.dtype)    # bf16 store


def prepare_ca_params(w, b, cond_dim):
    """One-time (hoisted) layout prep of nn.Linear params.

    w: (IN_DIM, 4*COND_DIM) f32 (transposed nn.Linear weight)
    b: (4*COND_DIM,) f32
    Returns (w_p bf16 (IN_DIM, 4*pad_cd), b_p f32 (1, 4*pad_cd), pad_cd).
    Pad columns are zero, so GLU of pads is 0 and nothing leaks.
    """
    in_dim, four_cd = w.shape
    assert four_cd == 4 * cond_dim
    pad_cd = _round_up(cond_dim, _LANE)
    pad_cols = pad_cd - cond_dim
    w_fields = [w[:, i * cond_dim:(i + 1) * cond_dim] for i in range(4)]
    b_fields = [b[i * cond_dim:(i + 1) * cond_dim] for i in range(4)]
    w_p = jnp.concatenate(
        [jnp.pad(f, ((0, 0), (0, pad_cols))) for f in w_fields], axis=1)
    b_p = jnp.concatenate(
        [jnp.pad(f, (0, pad_cols)) for f in b_fields]).reshape(1, 4 * pad_cd)
    return w_p.astype(jnp.bfloat16), b_p.astype(jnp.float32), pad_cd


def conditioning_augmentation(x, w_p, b_p, eps=None, *, cond_dim,
                              tile_b=1024, key=None):
    """Forward pass of ConditioningAugmentation.

    x:   (B, IN_DIM) f32 text-encoder output
    w_p, b_p: prepared params from prepare_ca_params (bf16 / f32)
    eps: optional (B, COND_DIM) standard-normal noise (bf16 preferred);
         if None, noise is drawn here (matching torch.randn_like semantics).
    Returns (cond bf16, mu f32, log_var f32), each (B, COND_DIM).
    """
    B, in_dim = x.shape
    pad_cd = w_p.shape[1] // 4
    tile_b = max(_ROW, _round_up(tile_b, _ROW))

    if B <= tile_b:
        b_pad = _round_up(B, _ROW)
        if b_pad >= 2 * _ROW:
            # >=2 grid steps so "parallel" shards the batch over both v7x TCs.
            b_pad = _round_up(B, 2 * _ROW)
            tile_b = b_pad // 2
        else:
            tile_b = b_pad
    else:
        b_pad = _round_up(B, tile_b)

    x_p = jnp.pad(x, ((0, b_pad - B), (0, 0))) if b_pad != B else x

    if eps is None:
        key = jax.random.PRNGKey(0) if key is None else key
        # Drawn directly at padded shape in bf16 -> no extra cast/pad pass.
        eps_p = jax.random.normal(key, (b_pad, pad_cd), jnp.bfloat16)
    else:
        eps_p = jnp.pad(eps, ((0, b_pad - B), (0, pad_cd - eps.shape[1])))

    grid = (b_pad // tile_b,)
    cond_out, muvar_out = pl.pallas_call(
        functools.partial(_ca_kernel, pad_cd=pad_cd),
        out_shape=(
            jax.ShapeDtypeStruct((b_pad, pad_cd), jnp.bfloat16),      # cond
            jax.ShapeDtypeStruct((b_pad, 2 * pad_cd), jnp.float32),   # mu|logvar
        ),
        grid=grid,
        in_specs=[
            pl.BlockSpec((tile_b, in_dim), lambda i: (i, 0)),          # x tile
            pl.BlockSpec((in_dim, 4 * pad_cd), lambda i: (0, 0)),      # W resident
            pl.BlockSpec((1, 4 * pad_cd), lambda i: (0, 0)),           # b resident
            pl.BlockSpec((tile_b, pad_cd), lambda i: (i, 0)),          # eps tile
        ],
        out_specs=(
            pl.BlockSpec((tile_b, pad_cd), lambda i: (i, 0)),
            pl.BlockSpec((tile_b, 2 * pad_cd), lambda i: (i, 0)),
        ),
        compiler_params=pltpu.CompilerParams(
            dimension_semantics=("parallel",),
            vmem_limit_bytes=32 * 1024 * 1024),
    )(x_p, w_p, b_p, eps_p)

    cond = cond_out[:B, :cond_dim]
    mu = muvar_out[:B, :cond_dim]
    log_var = muvar_out[:B, pad_cd:pad_cd + cond_dim]
    return cond, mu, log_var


def _reference(x, w, b, eps):
    """Pure-JAX f32 reference replicating the PyTorch forward."""
    y = x @ w + b
    half = y.shape[-1] // 2
    glu = y[:, :half] * jax.nn.sigmoid(y[:, half:])
    cd = half // 2
    mu = glu[:, :cd]
    log_var = glu[:, cd:]
    std = jnp.exp(log_var / 2)
    return mu + eps * std, mu, log_var


if __name__ == "__main__":
    B = 2
    IN_DIM = 32        # stands in for the default 256 (text-encoder output dim)
    COND_DIM = 16      # stands in for the default 100 (condition dim)

    key = jax.random.PRNGKey(0)
    k_w, k_b, k_x, k_eps = jax.random.split(key, 4)

    # Deterministic synthetic params; shapes match nn.Linear(IN_DIM, 4*COND_DIM)
    # with the weight stored transposed as (IN_DIM, 4*COND_DIM).
    w = (jax.random.normal(k_w, (IN_DIM, 4 * COND_DIM), jnp.float32)
         * (1.0 / jnp.sqrt(IN_DIM)))
    b = jax.random.normal(k_b, (4 * COND_DIM,), jnp.float32) * 0.01

    x = jax.random.normal(k_x, (B, IN_DIM), jnp.float32)
    # Noise drawn directly in bf16 (randn_like equivalent, half HBM traffic).
    eps = jax.random.normal(k_eps, (B, COND_DIM), jnp.bfloat16)

    # Hoisted, one-time param layout prep (not on the per-call forward path).
    w_p, b_p, _ = prepare_ca_params(w, b, COND_DIM)

    forward = jax.jit(functools.partial(conditioning_augmentation,
                                        cond_dim=COND_DIM))
    cond, mu, log_var = forward(x, w_p, b_p, eps)
    jax.block_until_ready((cond, mu, log_var))

    ref_cond, ref_mu, ref_lv = _reference(x, w, b, eps.astype(jnp.float32))
    # bf16 matmul operands / bf16 cond output => relaxed tolerance vs f32 ref.
    assert cond.shape == (B, COND_DIM) and mu.shape == (B, COND_DIM)
    assert log_var.shape == (B, COND_DIM)
    assert jnp.allclose(cond.astype(jnp.float32), ref_cond, atol=5e-2, rtol=5e-2)
    assert jnp.allclose(mu, ref_mu, atol=5e-2, rtol=5e-2)
    assert jnp.allclose(log_var, ref_lv, atol=5e-2, rtol=5e-2)

    print("KERNEL_OK")
</pallas_src>

<mosaic_0001>
module attributes {stable_mosaic.version = 11 : i64} {
  func.func @_ca_kernel(%arg0: i32, %arg1: memref<16x32xf32, #tpu.memory_space<vmem>>, %arg2: memref<32x512xbf16, #tpu.memory_space<vmem>>, %arg3: memref<1x512xf32, #tpu.memory_space<vmem>>, %arg4: memref<16x128xbf16, #tpu.memory_space<vmem>>, %arg5: memref<16x128xbf16, #tpu.memory_space<vmem>>, %arg6: memref<16x256xf32, #tpu.memory_space<vmem>>) attributes {dimension_semantics = [#tpu.dimension_semantics<parallel>], iteration_bounds = array<i64: 1>, scalar_prefetch = 0 : i64, scratch_operands = 0 : i64, tpu.core_type = #tpu.core_type<tc>, window_params = [{transform_indices = @transform_0, window_bounds = array<i64: 16, 32>}, {pipeline_mode = #tpu.pipeline_mode<synchronous>, transform_indices = @transform_1, window_bounds = array<i64: 32, 512>}, {pipeline_mode = #tpu.pipeline_mode<synchronous>, transform_indices = @transform_2, window_bounds = array<i64: 1, 512>}, {transform_indices = @transform_3, window_bounds = array<i64: 16, 128>}, {transform_indices = @transform_4, window_bounds = array<i64: 16, 128>}, {transform_indices = @transform_5, window_bounds = array<i64: 16, 256>}]} {
    %c0 = arith.constant 0 : index
    %c0_0 = arith.constant 0 : index
    %0 = vector.load %arg1[%c0, %c0_0] : memref<16x32xf32, #tpu.memory_space<vmem>>, vector<16x32xf32>
    %1 = arith.truncf %0 : vector<16x32xf32> to vector<16x32xbf16>
    %c0_1 = arith.constant 0 : index
    %c0_2 = arith.constant 0 : index
    %2 = vector.load %arg2[%c0_1, %c0_2] : memref<32x512xbf16, #tpu.memory_space<vmem>>, vector<32x512xbf16>
    %cst = arith.constant dense<0.000000e+00> : vector<16x512xf32>
    %3 = tpu.matmul %1, %2, %cst {dimension_numbers = #tpu.dot_dimension_numbers<[1], [0], [0], [1], [0, 0, 1, 1], [], []>} : vector<16x32xbf16>, vector<32x512xbf16>, vector<16x512xf32> -> vector<16x512xf32>
    %c0_3 = arith.constant 0 : index
    %c0_4 = arith.constant 0 : index
    %4 = vector.load %arg3[%c0_3, %c0_4] : memref<1x512xf32, #tpu.memory_space<vmem>>, vector<1x512xf32>
    %5 = vector.broadcast %4 : vector<1x512xf32> to vector<16x512xf32>
    %6 = arith.addf %3, %5 : vector<16x512xf32>
    %7 = vector.extract_strided_slice %6 {offsets = [0, 0], sizes = [16, 256], strides = [1, 1]} : vector<16x512xf32> to vector<16x256xf32>
    %8 = vector.extract_strided_slice %6 {offsets = [0, 256], sizes = [16, 256], strides = [1, 1]} : vector<16x512xf32> to vector<16x256xf32>
    %9 = arith.negf %8 : vector<16x256xf32>
    %10 = math.exp %9 : vector<16x256xf32>
    %cst_5 = arith.constant 1.000000e+00 : f32
    %11 = vector.broadcast %cst_5 : f32 to vector<16x256xf32>
    %12 = arith.addf %11, %10 : vector<16x256xf32>
    %13 = arith.divf %11, %12 : vector<16x256xf32>
    %14 = arith.mulf %7, %13 : vector<16x256xf32>
    %c0_6 = arith.constant 0 : index
    %c0_7 = arith.constant 0 : index
    %15 = vector.load %arg6[%c0_6, %c0_7] : memref<16x256xf32, #tpu.memory_space<vmem>>, vector<16x256xf32>
    tpu.vector_store %arg6[%c0_6, %c0_7], %14 {strides = array<i32>} : memref<16x256xf32, #tpu.memory_space<vmem>>, vector<16x256xf32>,
    %16 = vector.extract_strided_slice %14 {offsets = [0, 0], sizes = [16, 128], strides = [1, 1]} : vector<16x256xf32> to vector<16x128xf32>
    %17 = vector.extract_strided_slice %14 {offsets = [0, 128], sizes = [16, 128], strides = [1, 1]} : vector<16x256xf32> to vector<16x128xf32>
    %cst_8 = arith.constant 5.000000e-01 : f32
    %18 = vector.broadcast %cst_8 : f32 to vector<16x128xf32>
    %19 = arith.mulf %17, %18 : vector<16x128xf32>
    %20 = math.exp %19 : vector<16x128xf32>
    %c0_9 = arith.constant 0 : index
    %c0_10 = arith.constant 0 : index
    %21 = vector.load %arg4[%c0_9, %c0_10] : memref<16x128xbf16, #tpu.memory_space<vmem>>, vector<16x128xbf16>
    %22 = arith.extf %21 : vector<16x128xbf16> to vector<16x128xf32>
    %23 = arith.mulf %22, %20 : vector<16x128xf32>
    %24 = arith.addf %16, %23 : vector<16x128xf32>
    %25 = arith.truncf %24 : vector<16x128xf32> to vector<16x128xbf16>
    %c0_11 = arith.constant 0 : index
    %c0_12 = arith.constant 0 : index
    %26 = vector.load %arg5[%c0_11, %c0_12] : memref<16x128xbf16, #tpu.memory_space<vmem>>, vector<16x128xbf16>
    tpu.vector_store %arg5[%c0_11, %c0_12], %25 {strides = array<i32>} : memref<16x128xbf16, #tpu.memory_space<vmem>>, vector<16x128xbf16>,
    return
  }
  func.func @transform_0(%arg0: i32) -> (i32, i32) {
    %c0_i32 = arith.constant 0 : i32
    %c0_i32_0 = arith.constant 0 : i32
    return %arg0, %c0_i32 : i32, i32
  }
  func.func @transform_1(%arg0: i32) -> (i32, i32) {
    %c0_i32 = arith.constant 0 : i32
    %c0_i32_0 = arith.constant 0 : i32
    %c0_i32_1 = arith.constant 0 : i32
    return %c0_i32, %c0_i32_0 : i32, i32
  }
  func.func @transform_2(%arg0: i32) -> (i32, i32) {
    %c0_i32 = arith.constant 0 : i32
    %c0_i32_0 = arith.constant 0 : i32
    %c0_i32_1 = arith.constant 0 : i32
    return %c0_i32, %c0_i32_0 : i32, i32
  }
  func.func @transform_3(%arg0: i32) -> (i32, i32) {
    %c0_i32 = arith.constant 0 : i32
    %c0_i32_0 = arith.constant 0 : i32
    return %arg0, %c0_i32 : i32, i32
  }
  func.func @transform_4(%arg0: i32) -> (i32, i32) {
    %c0_i32 = arith.constant 0 : i32
    %c0_i32_0 = arith.constant 0 : i32
    return %arg0, %c0_i32 : i32, i32
  }
  func.func @transform_5(%arg0: i32) -> (i32, i32) {
    %c0_i32 = arith.constant 0 : i32
    %c0_i32_0 = arith.constant 0 : i32
    return %arg0, %c0_i32 : i32, i32
  }
}

</mosaic_0001>

<llo_original>
// kernel: conditioning_augmentation.1
$region0: #{conditioning_augmentation.1}
  #allocation0 [shape = 'u32[]', space=smem, size = 0x4, offset = 0x4, fixed_abs, tag = 'smem constant byte address 0x4 - core index']
  #allocation1 [shape = 'u32[144,128]{1,0:T(1,128)}', space=vmem, size = 0x12000, scoped, tag = 'internal scratch']
  %s0 = inlined_call_operand.vmem [shape: f32[16,32], index: 0, kind: input, shape index: {}]
  %s1 = inlined_call_operand.hbm [shape: bf16[32,512], index: 1, kind: input, shape index: {}]
  %s2 = inlined_call_operand.vmem [shape: f32[1,512], index: 2, kind: input, shape index: {}]
  %s3 = inlined_call_operand.vmem [shape: bf16[16,128], index: 3, kind: input, shape index: {}]
  %s4 = inlined_call_operand.vmem [shape: bf16[16,128], index: 4, kind: output, shape index: {0}]
  %s5 = inlined_call_operand.vmem [shape: f32[16,256], index: 5, kind: output, shape index: {1}]
  %6 = xla_tuple %s4, %s5
  %s7 = sld [smem:[#allocation0]]
  $region38: #{conditioning_augmentation.1} parent=0
    _
  %s9 = ssub.s32 1, %s7
  %s10 = scalar_select 0, %s9, %s7
  $region1: #{conditioning_augmentation.1} parent=0
    #allocation2 [shape = 'u8[32768]{0}', space=vmem, size = 0x8000, scoped, tag = 'input window, operand 1, single buffered']
    #allocation3 [shape = 's32[1]{0}', space=sflag, size = 0x4, scoped, tag = 'scoped memory for conditioning_augmentation.1']
    %11 = vsyncpa [#allocation3], 0
    // Predicated region
    $region2: #{conditioning_augmentation.1} parent=1 // pred_check
      _
    $region3: #{conditioning_augmentation.1} parent=1 // pred_check_branch
      %13 = sbr.rel (0) target = $region5
    $region4: #{conditioning_augmentation.1} parent=1 // pred_region
      _
    $region5: #{conditioning_augmentation.1} parent=1 // pred_fallthru
      _
    // Predicated region
    $region6: #{conditioning_augmentation.1} parent=1 // pred_check
      _
    $region7: #{conditioning_augmentation.1} parent=1 // pred_check_branch
      %15 = sbr.rel (0) target = $region9
    $region8: #{conditioning_augmentation.1} parent=1 // pred_region
      %s17 = ssub.s32 1024, 1024
      %18 = vsyncadd [#allocation3], %s17
      %s19 = sshll.u32 [#allocation2], 4
      %s20 = int_to_ptr.vmem [resolvable:$true] %s19
      %25 = dma.hbm_to_vmem [thread:$0]  %s1, 1024, %s20, [#allocation3], 256, 256, 16
    $region9: #{conditioning_augmentation.1} parent=1 // pred_fallthru
      _
    // Predicated region
    $region10: #{conditioning_augmentation.1} parent=1 // pred_check
      _
    $region11: #{conditioning_augmentation.1} parent=1 // pred_check_branch
      %27 = sbr.rel (0) target = $region13
    $region12: #{conditioning_augmentation.1} parent=1 // pred_region
      _
    $region13: #{conditioning_augmentation.1} parent=1 // pred_fallthru
      _
    // Predicated region
    $region14: #{conditioning_augmentation.1} parent=1 // pred_check
      _
    $region15: #{conditioning_augmentation.1} parent=1 // pred_check_branch
      %29 = sbr.rel (0) target = $region17
    $region16: #{conditioning_augmentation.1} parent=1 // pred_region
      _
    $region17: #{conditioning_augmentation.1} parent=1 // pred_fallthru
      _
    // Predicated region
    $region18: #{conditioning_augmentation.1} parent=1 // pred_check
      _
    $region19: #{conditioning_augmentation.1} parent=1 // pred_check_branch
      %31 = sbr.rel (0) target = $region21
    $region20: #{conditioning_augmentation.1} parent=1 // pred_region
      %32 = dma.done [#allocation3], 1024
    $region21: #{conditioning_augmentation.1} parent=1 // pred_fallthru
      _
    %v34 = vld [vmem:[%s0] sm:$0xff]
    %v35 = vld [vmem:[%s0 + $0x8] sm:$0xff]
    %v36 = vpack.c.bf16 %v35, %v34
    %v37 = vld [vmem:[#allocation2] sm:$0xff]
    %v38 = vld [vmem:[#allocation2 + $0x8] sm:$0xff]
    %v39 = vld [vmem:[#allocation2 + $0x10] sm:$0xff]
    %v40 = vld [vmem:[#allocation2 + $0x18] sm:$0xff]
    %v41 = vld [vmem:[#allocation2 + $0x20] sm:$0xff]
    %v42 = vld [vmem:[#allocation2 + $0x28] sm:$0xff]
    %v43 = vld [vmem:[#allocation2 + $0x30] sm:$0xff]
    %v44 = vld [vmem:[#allocation2 + $0x38] sm:$0xff]
    %v45 = vld [vmem:[%s2] sm:$0xf]
    %v47 = vlaneseq
    %v48 = vshrl.u32 %v47, 7
    %v49 = vsub.s32 0, %v48
    %v50 = vrot.slane %v45, %v49
    %v51 = vlaneseq
    %v52 = vshrl.u32 %v51, 7
    %v53 = vsub.s32 1, %v52
    %v54 = vrot.slane %v45, %v53
    %v55 = vlaneseq
    %v56 = vshrl.u32 %v55, 7
    %v57 = vsub.s32 2, %v56
    %v58 = vrot.slane %v45, %v57
    %v59 = vlaneseq
    %v60 = vshrl.u32 %v59, 7
    %v61 = vsub.s32 3, %v60
    %v62 = vrot.slane %v45, %v61
    %v75 = vunpack.c.l.b16 %v37
    %v76 = vunpack.c.h.b16 %v37
    %v77 = vunpack.c.l.b16 %v38
    %v78 = vunpack.c.h.b16 %v38
    %v79 = vunpack.c.l.b16 %v39
    %v80 = vunpack.c.h.b16 %v39
    %v81 = vunpack.c.l.b16 %v40
    %v82 = vunpack.c.h.b16 %v40
    %v83 = vunpack.c.l.b16 %v41
    %v84 = vunpack.c.h.b16 %v41
    %v85 = vunpack.c.l.b16 %v42
    %v86 = vunpack.c.h.b16 %v42
    %v87 = vunpack.c.l.b16 %v43
    %v88 = vunpack.c.h.b16 %v43
    %v89 = vunpack.c.l.b16 %v44
    %v90 = vunpack.c.h.b16 %v44
    %v91 = vpack.c.b16 %v79, %v75
    %v92 = vpack.c.b16 %v80, %v76
    %v93 = vpack.c.b16 %v81, %v77
    %v94 = vpack.c.b16 %v82, %v78
    %v95 = vpack.c.b16 %v87, %v83
    %v96 = vpack.c.b16 %v88, %v84
    %v97 = vpack.c.b16 %v89, %v85
    %v98 = vpack.c.b16 %v90, %v86
    %vm107 = vcmask 261120
    %v109 = vsel %vm107, %v36, 0
    %111 = vmatprep.subr.bf16.mxu0 0
    %112 = vmatpush1.bf16.msra.mxu0 0
    %113 = vmatprep.subr.bf16.mxu0 0
    %114 = vmatpush1.bf16.msra.mxu0 0
    %115 = vmatprep.subr.bf16.mxu0 0
    %116 = vmatpush1.bf16.msra.mxu0 0
    %117 = vmatprep.subr.bf16.mxu0 0
    %118 = vmatpush1.bf16.msra.mxu0 0
    %119 = vmatprep.subr.bf16.mxu0 0
    %120 = vmatpush1.bf16.msra.mxu0 0
    %121 = vmatprep.subr.bf16.mxu0 0
    %122 = vmatpush1.bf16.msra.mxu0 0
    %123 = vmatprep.subr.bf16.mxu0 %v96
    %124 = vmatpush1.bf16.msra.mxu0 %v95
    %125 = vmatprep.subr.bf16.mxu0 %v92
    %126 = vmatpush1.bf16.msra.mxu0 %v91
    %127 = vmatprep.subr.bf16.mxu0 0
    %128 = vmatpush2.bf16.msra.mxu0 0
    %129 = vmatprep.subr.bf16.mxu0 0
    %130 = vmatpush2.bf16.msra.mxu0 0
    %131 = vmatprep.subr.bf16.mxu0 0
    %132 = vmatpush2.bf16.msra.mxu0 0
    %133 = vmatprep.subr.bf16.mxu0 0
    %134 = vmatpush2.bf16.msra.mxu0 0
    %135 = vmatprep.subr.bf16.mxu0 0
    %136 = vmatpush2.bf16.msra.mxu0 0
    %137 = vmatprep.subr.bf16.mxu0 0
    %138 = vmatpush2.bf16.msra.mxu0 0
    %139 = vmatprep.subr.bf16.mxu0 0
    %140 = vmatpush2.bf16.msra.mxu0 0
    %141 = vmatprep.subr.bf16.mxu0 0
    %142 = vmatpush2.bf16.msra.mxu0 0
    %143 = vmatprep.mubr.bf16.mxu0 0
    %144 = vmatmul.mubr.bf16.gmra.mxu0 %v109
    %v145 = vpop.f32.mrf.mxu0
    %v146 = vadd.f32 %v50, %v145
    %v147 = vpop.f32.mrf.mxu0
    %v148 = vadd.f32 %v54, %v147
    %v149 = vpop.f32.mrf.mxu0
    %v150 = vadd.f32 %v50, %v149
    %v151 = vpop.f32.mrf.mxu0
    %v152 = vadd.f32 %v54, %v151
    %153 = vdwg.mxu0
    %154 = vmatprep.subr.bf16.mxu0 0
    %155 = vmatpush1.bf16.msra.mxu0 0
    %156 = vmatprep.subr.bf16.mxu0 0
    %157 = vmatpush1.bf16.msra.mxu0 0
    %158 = vmatprep.subr.bf16.mxu0 0
    %159 = vmatpush1.bf16.msra.mxu0 0
    %160 = vmatprep.subr.bf16.mxu0 0
    %161 = vmatpush1.bf16.msra.mxu0 0
    %162 = vmatprep.subr.bf16.mxu0 0
    %163 = vmatpush1.bf16.msra.mxu0 0
    %164 = vmatprep.subr.bf16.mxu0 0
    %165 = vmatpush1.bf16.msra.mxu0 0
    %166 = vmatprep.subr.bf16.mxu0 %v98
    %167 = vmatpush1.bf16.msra.mxu0 %v97
    %168 = vmatprep.subr.bf16.mxu0 %v94
    %169 = vmatpush1.bf16.msra.mxu0 %v93
    %170 = vmatprep.subr.bf16.mxu0 0
    %171 = vmatpush2.bf16.msra.mxu0 0
    %172 = vmatprep.subr.bf16.mxu0 0
    %173 = vmatpush2.bf16.msra.mxu0 0
    %174 = vmatprep.subr.bf16.mxu0 0
    %175 = vmatpush2.bf16.msra.mxu0 0
    %176 = vmatprep.subr.bf16.mxu0 0
    %177 = vmatpush2.bf16.msra.mxu0 0
    %178 = vmatprep.subr.bf16.mxu0 0
    %179 = vmatpush2.bf16.msra.mxu0 0
    %180 = vmatprep.subr.bf16.mxu0 0
    %181 = vmatpush2.bf16.msra.mxu0 0
    %182 = vmatprep.subr.bf16.mxu0 0
    %183 = vmatpush2.bf16.msra.mxu0 0
    %184 = vmatprep.subr.bf16.mxu0 0
    %185 = vmatpush2.bf16.msra.mxu0 0
    %186 = vmatprep.mubr.bf16.mxu0 0
    %187 = vmatmul.mubr.bf16.gmra.mxu0 %v109
    %v188 = vpop.f32.mrf.mxu0
    %v189 = vadd.f32 %v58, %v188
    %v190 = vpop.f32.mrf.mxu0
    %v191 = vadd.f32 %v62, %v190
    %v192 = vpop.f32.mrf.mxu0
    %v193 = vadd.f32 %v58, %v192
    %v194 = vpop.f32.mrf.mxu0
    %v195 = vadd.f32 %v62, %v194
    %196 = vdwg.mxu0
    %v197 = vxor.u32 %v189, 2147483648
    %v198 = vxor.u32 %v191, 2147483648
    %v199 = vxor.u32 %v193, 2147483648
    %v200 = vxor.u32 %v195, 2147483648
    %v201 = vmul.f32 %v197, 1.442695
    %v202 = vpow.pop %v201
    %v203 = vmul.f32 %v198, 1.442695
    %v204 = vpow.pop %v203
    %v205 = vmul.f32 %v199, 1.442695
    %v206 = vpow.pop %v205
    %v207 = vmul.f32 %v200, 1.442695
    %v208 = vpow.pop %v207
    %v209 = vadd.f32 %v202, 1.0
    %v210 = vadd.f32 %v204, 1.0
    %v211 = vadd.f32 %v206, 1.0
    %v212 = vadd.f32 %v208, 1.0
    %v213 = vrcp.pop %v209
    %v214 = vmul.f32 1.0, %v213
    %v215 = vrcp.pop %v210
    %v216 = vmul.f32 1.0, %v215
    %v217 = vrcp.pop %v211
    %v218 = vmul.f32 1.0, %v217
    %v219 = vrcp.pop %v212
    %v220 = vmul.f32 1.0, %v219
    %v221 = vmul.f32 %v146, %v214
    %v222 = vmul.f32 %v148, %v216
    %v223 = vmul.f32 %v150, %v218
    %v224 = vmul.f32 %v152, %v220
    %225 = vst [vmem:[%s5] sm:$0xff] %v221
    %226 = vst [vmem:[%s5 + $0x8] sm:$0xff] %v222
    %227 = vst [vmem:[%s5 + $0x10] sm:$0xff] %v223
    %228 = vst [vmem:[%s5 + $0x18] sm:$0xff] %v224
    %v229 = vmul.f32 %v222, 0.5
    %v230 = vmul.f32 %v224, 0.5
    %v231 = vmul.f32 %v229, 1.442695
    %v232 = vpow.pop %v231
    %v233 = vmul.f32 %v230, 1.442695
    %v234 = vpow.pop %v233
    %v235 = vld [vmem:[%s3] sm:$0xf]
    %v236 = vld [vmem:[%s3 + $0x4] sm:$0xf]
    %v237 = vunpack.c.l.bf16 %v235
    %v238 = vunpack.c.l.bf16 %v236
    %v239 = vmul.f32 %v237, %v232
    %v240 = vmul.f32 %v238, %v234
    %v241 = vadd.f32 %v221, %v239
    %v242 = vadd.f32 %v223, %v240
    %v243 = vpack.c.bf16 %v242, %v241
    %v245 = vunpack.c.l.b16 %v243
    %v246 = vunpack.c.h.b16 %v243
    %v247 = vpack.c.b16 %v245, %v245
    %v248 = vpack.c.b16 %v246, %v246
    %251 = vst [vmem:[%s4] sm:$0xf] %v247
    %252 = vst [vmem:[%s4 + $0x4] sm:$0xf] %v248
    // Predicated region
    $region22: #{conditioning_augmentation.1} parent=1 // pred_check
      _
    $region23: #{conditioning_augmentation.1} parent=1 // pred_check_branch
      %254 = sbr.rel (0) target = $region25
    $region24: #{conditioning_augmentation.1} parent=1 // pred_region
      _
    $region25: #{conditioning_augmentation.1} parent=1 // pred_fallthru
      _
    // Predicated region
    $region26: #{conditioning_augmentation.1} parent=1 // pred_check
      _
    $region27: #{conditioning_augmentation.1} parent=1 // pred_check_branch
      %256 = sbr.rel (0) target = $region29
    $region28: #{conditioning_augmentation.1} parent=1 // pred_region
      _
    $region29: #{conditioning_augmentation.1} parent=1 // pred_fallthru
      _
    // Predicated region
    $region30: #{conditioning_augmentation.1} parent=1 // pred_check
      _
    $region31: #{conditioning_augmentation.1} parent=1 // pred_check_branch
      %258 = sbr.rel (0) target = $region33
    $region32: #{conditioning_augmentation.1} parent=1 // pred_region
      _
    $region33: #{conditioning_augmentation.1} parent=1 // pred_fallthru
      _
    // Predicated region
    $region34: #{conditioning_augmentation.1} parent=1 // pred_check
      _
    $region35: #{conditioning_augmentation.1} parent=1 // pred_check_branch
      %260 = sbr.rel (0) target = $region37
    $region36: #{conditioning_augmentation.1} parent=1 // pred_region
      _
    $region37: #{conditioning_augmentation.1} parent=1 // pred_fallthru
      _
    %261 = vsyncpa [#allocation3], 1

</llo_original>
